<compile_context>
chip_gen: v6e
topology: v6e:2x2x1
jax: 0.10.0
libtpu: 0.0.40
codegen_flags: <defaults>
</compile_context>

<pallas_src>
import functools
import math

import jax
import jax.numpy as jnp
from jax.experimental import pallas as pl
from jax.experimental.pallas import tpu as pltpu

_NEG_BIG = -1e30  # finite "minus infinity": avoids inf-inf NaNs in the rescale


def attention_pooling_kernel(x_ref, batch_ref, w1_ref, b1_ref, w2_ref,
                             acc_out_ref, m_out_ref, s_out_ref,
                             acc_ref, m_ref, s_ref, *,
                             num_graphs, n_valid, tiles_per_core):
    c = pl.program_id(0)        # core-split index ("parallel" axis)
    k = pl.program_id(1)        # node-tile index within the split ("arbitrary")

    @pl.when(k == 0)
    def _init():
        acc_ref[...] = jnp.zeros_like(acc_ref)
        m_ref[...] = jnp.full_like(m_ref, _NEG_BIG)
        s_ref[...] = jnp.zeros_like(s_ref)

    bn = x_ref.shape[0]

    # (1) Zero rows past n_valid (ragged last tile / clamped overflow tiles):
    # the un-DMA'd tail of a partial block is garbage, and 0 * garbage through
    # the MXU accumulate would produce NaN, so the rows themselves are cleared.
    node_base = (c * tiles_per_core + k) * bn
    node_idx = jax.lax.broadcasted_iota(jnp.int32, (bn, 1), 0) + node_base
    valid_col = node_idx < n_valid
    x = jnp.where(valid_col, x_ref[...], jnp.zeros((), x_ref.dtype))      # (bn, D) native dtype

    # --- attention MLP: MXU in the native input dtype, f32 accumulation (2) --
    h = jnp.dot(x, w1_ref[...], preferred_element_type=jnp.float32)        # (bn, Dh)
    h = h + b1_ref[...].astype(jnp.float32)
    h = 0.5 * h * (1.0 + jax.lax.erf(h * jnp.float32(1.0 / math.sqrt(2.0))))  # exact GELU
    # NOTE(#8): for D, Dh < 128 a (Dh, bn) lane-dense MLP orientation would use
    # the VPU/EUP better, but needs a transposed x presentation; skipped here.
    # (7) Linear(Dh -> 1) straight into (1, bn) row orientation on the MXU
    # (M=1, K=Dh); no XLU column->row transpose.  b2 omitted: softmax is
    # shift-invariant so it cancels exactly.
    logits_row = jax.lax.dot_general(
        w2_ref[...].astype(jnp.float32), h,
        dimension_numbers=(((1,), (1,)), ((), ())),
        preferred_element_type=jnp.float32)                                # (1, bn)

    # --- per-tile scatter-softmax statistics (online softmax) ----------------
    bt = batch_ref[...]                                       # (1, bn), -1 marks padding
    g_col = jax.lax.broadcasted_iota(jnp.int32, (num_graphs, 1), 0)   # (10) (G, 1)
    mask = g_col == bt                                        # (G, bn) membership

    masked = jnp.where(mask, logits_row, jnp.float32(_NEG_BIG))
    m_tile = jnp.max(masked, axis=1, keepdims=True)           # (G, 1)
    m_old = m_ref[...]
    m_new = jnp.maximum(m_old, m_tile)
    alpha = jnp.exp(m_old - m_new)                            # (G, 1); == 1 where unchanged

    # Gather each node's graph max through the mask -> only bn exps per tile.
    per_node_m = jnp.sum(jnp.where(mask, m_new, 0.0), axis=0, keepdims=True)  # (1, bn)
    p_row = jnp.exp(logits_row - per_node_m)                  # (1, bn)
    e = jnp.where(mask, p_row, 0.0)                           # (G, bn)

    contrib = jnp.dot(e.astype(x_ref.dtype), x,
                      preferred_element_type=jnp.float32)     # (G, D) on the MXU

    # Running accumulators; normalization deferred to the wrapper merge.
    # NOTE(#6): the alpha rescale could be skipped under a pl.when("any max
    # changed") predicate to save a (G, D) RMW on tiles that move no running
    # max; kept unconditional here (small next to the e @ x MXU work).
    s_ref[...] = alpha * s_ref[...] + jnp.sum(e, axis=1, keepdims=True)
    acc_ref[...] = alpha * acc_ref[...] + contrib
    m_ref[...] = m_new

    @pl.when(k == pl.num_programs(1) - 1)
    def _finalize():
        acc_out_ref[...] = acc_ref[...]
        m_out_ref[...] = m_ref[...]
        s_out_ref[...] = s_ref[...]


def attention_pooling(x, batch, w1, b1, w2, b2, num_graphs, *,
                      block_n=1024, num_core_splits=2):
    """x: (N, D); batch: (N,) int32 graph ids in [0, num_graphs).

    block_n: node-tile size (forced to a multiple of 128).  Sweep per
      generation: ~1024-2048 on v5e/v6e (128 MiB physical VMEM), ~512-1024 on
      v7x (64 MiB physical).
    num_core_splits: extent of the leading "parallel" grid axis.  2 uses both
      TensorCores on v7x; near-neutral on single-TC v5e/v6e.
    """
    del b2  # final-linear bias cancels under the per-graph softmax
    n, d = x.shape
    dh = w1.shape[1]
    x_dtype = x.dtype

    block_n = max(128, (block_n // 128) * 128)
    num_tiles = pl.cdiv(n, block_n)
    n_splits = max(1, min(int(num_core_splits), num_tiles))
    tpc = pl.cdiv(num_tiles, n_splits)           # logical node tiles per core split
    n_pad = n_splits * tpc * block_n
    g_pad = pl.cdiv(num_graphs, 8) * 8
    last_block = num_tiles - 1

    # (1) x streams straight from HBM (partial last block, no padded copy); only
    #     the tiny graph-id row is padded, with -1 so pad nodes match no graph.
    batch_row = jnp.full((1, n_pad), -1, jnp.int32).at[0, :n].set(batch.astype(jnp.int32))
    # (2) keep weights in the activation dtype so the MXU runs bf16-native when
    #     activations are bf16 (tiny one-time cast).
    w1_c = w1.astype(x_dtype)
    b1_row = b1.reshape(1, dh)
    w2_row = w2.reshape(1, dh)

    kernel = functools.partial(attention_pooling_kernel,
                               num_graphs=g_pad, n_valid=n, tiles_per_core=tpc)

    # NOTE(#4): for sorted `batch` with large num_graphs, scalar-prefetched
    # per-tile [g_lo, g_hi) windows would bound the mask / accumulator updates
    # to the graphs actually present in each tile; not implemented here.
    grid_spec = pltpu.PrefetchScalarGridSpec(
        num_scalar_prefetch=0,
        grid=(n_splits, tpc),
        in_specs=[
            # x node tile; overflow logical tiles clamp to the last real block
            # (their rows are zeroed in-kernel via the node-index mask).
            pl.BlockSpec((block_n, d),
                         lambda c, k: (jnp.minimum(c * tpc + k, last_block), 0)),
            pl.BlockSpec((1, block_n), lambda c, k: (0, c * tpc + k)),   # graph ids
            # NOTE(#9): weights are tiny here; for very large D*Dh they should be
            # single-buffered (or DMA'd once to scratch) to halve their VMEM use.
            pl.BlockSpec((d, dh), lambda c, k: (0, 0)),                  # w1 (resident)
            pl.BlockSpec((1, dh), lambda c, k: (0, 0)),                  # b1
            pl.BlockSpec((1, dh), lambda c, k: (0, 0)),                  # w2 as a row
        ],
        out_specs=[
            pl.BlockSpec((None, g_pad, d), lambda c, k: (c, 0, 0)),      # acc partial
            pl.BlockSpec((None, g_pad, 1), lambda c, k: (c, 0, 0)),      # running max
            pl.BlockSpec((None, g_pad, 1), lambda c, k: (c, 0, 0)),      # exp-sum
        ],
        scratch_shapes=[
            pltpu.VMEM((g_pad, d), jnp.float32),   # acc: unnormalized pooled sums
            pltpu.VMEM((g_pad, 1), jnp.float32),   # running per-graph max
            pltpu.VMEM((g_pad, 1), jnp.float32),   # running per-graph exp-sum
        ],
    )

    # (5) scoped-VMEM limit from the actual buffer budget (defaults are only
    #     16 MiB on v5e / 32 MiB on v6e+, far below physical).
    itemsize = jnp.dtype(x_dtype).itemsize
    est = (2 * block_n * d * itemsize                 # x tile double buffer
           + 2 * block_n * 4                          # graph-id row double buffer
           + 2 * (d * dh + 2 * dh) * itemsize         # weights (pipeline double-buffers)
           + 2 * (g_pad * d + 2 * g_pad) * 4          # partial outputs
           + (g_pad * d + 2 * g_pad) * 4              # accumulator scratch
           + 6 * block_n * max(d, dh) * 4             # live f32 intermediates
           + 3 * g_pad * block_n * 4)                 # mask / e intermediates
    vmem_limit = int(min(max(2 * est, 32 * 1024 * 1024), 100 * 1024 * 1024))

    p_acc, p_m, p_s = pl.pallas_call(
        kernel,
        out_shape=(
            jax.ShapeDtypeStruct((n_splits, g_pad, d), jnp.float32),
            jax.ShapeDtypeStruct((n_splits, g_pad, 1), jnp.float32),
            jax.ShapeDtypeStruct((n_splits, g_pad, 1), jnp.float32),
        ),
        grid_spec=grid_spec,
        compiler_params=pltpu.CompilerParams(
            dimension_semantics=("parallel", "arbitrary"),
            vmem_limit_bytes=vmem_limit),
    )(x, batch_row, w1_c, b1_row, w2_row)

    # (3) merge the per-core-split online-softmax partials (O(C*G*D), trivial).
    m_all = jnp.max(p_m, axis=0)                       # (g_pad, 1)
    scale = jnp.exp(p_m - m_all)                       # (C, g_pad, 1)
    s_tot = jnp.sum(p_s * scale, axis=0)               # (g_pad, 1)
    acc_tot = jnp.sum(p_acc * scale, axis=0)           # (g_pad, d)
    s_safe = jnp.where(s_tot > 0.0, s_tot, 1.0)        # guard empty / padded graphs
    return (acc_tot / s_safe).astype(x_dtype)[:num_graphs]


def reference(x, batch, w1, b1, w2, b2, num_graphs):
    h = x @ w1 + b1
    h = 0.5 * h * (1.0 + jax.lax.erf(h / jnp.sqrt(2.0)))
    logits = (h @ w2 + b2)[:, 0]                                   # (N,)
    one_hot = (batch[None, :] == jnp.arange(num_graphs)[:, None])  # (G, N)
    masked = jnp.where(one_hot, logits[None, :], -1e30)
    gmax = masked.max(axis=1, keepdims=True)
    e = jnp.where(one_hot, jnp.exp(masked - gmax), 0.0)
    attn = e / jnp.maximum(e.sum(axis=1, keepdims=True), 1e-30)
    return attn @ x


if __name__ == "__main__":
    N, D, G = 300, 32, 5
    Dh = D // 2
    BLOCK_N = 128   # 3 real tiles: core-split 0 gets 2 (exercises the online
                    # softmax update), split 1 gets the ragged tail plus one
                    # clamped overflow tile, then the partials are merged.

    key = jax.random.PRNGKey(0)
    kx, kw1, kb1, kw2, kb2 = jax.random.split(key, 5)

    x = jax.random.normal(kx, (N, D), dtype=jnp.float32)
    counts = jnp.array([70, 65, 60, 55, 50], dtype=jnp.int32)      # sums to N
    batch = jnp.repeat(jnp.arange(G, dtype=jnp.int32), counts)

    # PyTorch Linear weights are (out,in); stored pre-transposed as (in,out).
    bound1 = 1.0 / math.sqrt(D)
    bound2 = 1.0 / math.sqrt(Dh)
    w1 = jax.random.uniform(kw1, (D, Dh), jnp.float32, -bound1, bound1)
    b1 = jax.random.uniform(kb1, (Dh,), jnp.float32, -bound1, bound1)
    w2 = jax.random.uniform(kw2, (Dh, 1), jnp.float32, -bound2, bound2)
    b2 = jax.random.uniform(kb2, (1,), jnp.float32, -bound2, bound2)

    # f32 activations.
    out = attention_pooling(x, batch, w1, b1, w2, b2, G,
                            block_n=BLOCK_N, num_core_splits=2)
    out = jax.block_until_ready(out)
    ref = reference(x, batch, w1, b1, w2, b2, G)
    assert out.shape == (G, D)
    assert jnp.allclose(out, ref, atol=1e-4, rtol=1e-4), "f32 mismatch vs reference"

    # bf16 activations exercise the native-dtype MXU path (no forced f32 cast).
    x_bf = x.astype(jnp.bfloat16)
    out_bf = attention_pooling(x_bf, batch, w1, b1, w2, b2, G,
                               block_n=BLOCK_N, num_core_splits=2)
    out_bf = jax.block_until_ready(out_bf)
    ref_bf = reference(x_bf.astype(jnp.float32), batch, w1, b1, w2, b2, G)
    assert jnp.allclose(out_bf.astype(jnp.float32), ref_bf,
                        atol=5e-2, rtol=5e-2), "bf16 mismatch vs reference"

    print("KERNEL_OK")
</pallas_src>

<mosaic_0001>
module attributes {stable_mosaic.version = 11 : i64} {
  func.func @attention_pooling_kernel(%arg0: i32, %arg1: i32, %arg2: memref<128x32xf32, #tpu.memory_space<vmem>>, %arg3: memref<1x128xi32, #tpu.memory_space<vmem>>, %arg4: memref<32x16xf32, #tpu.memory_space<vmem>>, %arg5: memref<1x16xf32, #tpu.memory_space<vmem>>, %arg6: memref<1x16xf32, #tpu.memory_space<vmem>>, %arg7: memref<1x8x32xf32, #tpu.memory_space<vmem>>, %arg8: memref<1x8x1xf32, #tpu.memory_space<vmem>>, %arg9: memref<1x8x1xf32, #tpu.memory_space<vmem>>, %arg10: memref<8x32xf32, #tpu.memory_space<vmem>>, %arg11: memref<8x1xf32, #tpu.memory_space<vmem>>, %arg12: memref<8x1xf32, #tpu.memory_space<vmem>>) attributes {dimension_semantics = [#tpu.dimension_semantics<parallel>, #tpu.dimension_semantics<arbitrary>], iteration_bounds = array<i64: 2, 2>, scalar_prefetch = 0 : i64, scratch_operands = 3 : i64, tpu.core_type = #tpu.core_type<tc>, window_params = [{transform_indices = @transform_0, window_bounds = array<i64: 128, 32>}, {transform_indices = @transform_1, window_bounds = array<i64: 1, 128>}, {pipeline_mode = #tpu.pipeline_mode<synchronous>, transform_indices = @transform_2, window_bounds = array<i64: 32, 16>}, {pipeline_mode = #tpu.pipeline_mode<synchronous>, transform_indices = @transform_3, window_bounds = array<i64: 1, 16>}, {pipeline_mode = #tpu.pipeline_mode<synchronous>, transform_indices = @transform_4, window_bounds = array<i64: 1, 16>}, {transform_indices = @transform_5, window_bounds = array<i64: 1, 8, 32>}, {transform_indices = @transform_6, window_bounds = array<i64: 1, 8, 1>}, {transform_indices = @transform_7, window_bounds = array<i64: 1, 8, 1>}]} {
    %c0_i32 = arith.constant 0 : i32
    %0 = arith.cmpi eq, %arg1, %c0_i32 : i32
    %1 = arith.extui %0 : i1 to i32
    %c0_i32_0 = arith.constant 0 : i32
    %2 = arith.cmpi ne, %1, %c0_i32_0 : i32
    scf.if %2 {
      %cst_35 = arith.constant 0.000000e+00 : f32
      %74 = vector.broadcast %cst_35 : f32 to vector<8x32xf32>
      %c0_36 = arith.constant 0 : index
      %c0_37 = arith.constant 0 : index
      %75 = vector.load %arg10[%c0_36, %c0_37] : memref<8x32xf32, #tpu.memory_space<vmem>>, vector<8x32xf32>
      tpu.vector_store %arg10[%c0_36, %c0_37], %74 {strides = array<i32>} : memref<8x32xf32, #tpu.memory_space<vmem>>, vector<8x32xf32>,
      %cst_38 = arith.constant -1.000000e+30 : f32
      %76 = vector.broadcast %cst_38 : f32 to vector<8x1xf32>
      %c0_39 = arith.constant 0 : index
      %c0_40 = arith.constant 0 : index
      %77 = vector.load %arg11[%c0_39, %c0_40] : memref<8x1xf32, #tpu.memory_space<vmem>>, vector<8x1xf32>
      tpu.vector_store %arg11[%c0_39, %c0_40], %76 {strides = array<i32>} : memref<8x1xf32, #tpu.memory_space<vmem>>, vector<8x1xf32>,
      %cst_41 = arith.constant 0.000000e+00 : f32
      %78 = vector.broadcast %cst_41 : f32 to vector<8x1xf32>
      %c0_42 = arith.constant 0 : index
      %c0_43 = arith.constant 0 : index
      %79 = vector.load %arg12[%c0_42, %c0_43] : memref<8x1xf32, #tpu.memory_space<vmem>>, vector<8x1xf32>
      tpu.vector_store %arg12[%c0_42, %c0_43], %78 {strides = array<i32>} : memref<8x1xf32, #tpu.memory_space<vmem>>, vector<8x1xf32>,
    } else {
    }
    %c2_i32 = arith.constant 2 : i32
    %3 = arith.muli %arg0, %c2_i32 : i32
    %4 = arith.addi %3, %arg1 : i32
    %c128_i32 = arith.constant 128 : i32
    %5 = arith.muli %4, %c128_i32 : i32
    %6 = tpu.iota {dimensions = array<i32: 0>} : vector<128x1xi32>
    %7 = vector.broadcast %5 : i32 to vector<128x1xi32>
    %8 = arith.addi %6, %7 : vector<128x1xi32>
    %c300_i32 = arith.constant 300 : i32
    %9 = vector.broadcast %c300_i32 : i32 to vector<128x1xi32>
    %10 = arith.cmpi slt, %8, %9 : vector<128x1xi32>
    %c0 = arith.constant 0 : index
    %c0_1 = arith.constant 0 : index
    %11 = vector.load %arg2[%c0, %c0_1] : memref<128x32xf32, #tpu.memory_space<vmem>>, vector<128x32xf32>
    %cst = arith.constant 0.000000e+00 : f32
    %12 = vector.shape_cast %10 : vector<128x1xi1> to vector<128x1xi1>
    %13 = vector.broadcast %12 : vector<128x1xi1> to vector<128x32xi1>
    %14 = vector.broadcast %cst : f32 to vector<128x32xf32>
    %15 = arith.select %13, %11, %14 : vector<128x32xi1>, vector<128x32xf32>
    %c0_2 = arith.constant 0 : index
    %c0_3 = arith.constant 0 : index
    %16 = vector.load %arg4[%c0_2, %c0_3] : memref<32x16xf32, #tpu.memory_space<vmem>>, vector<32x16xf32>
    %cst_4 = arith.constant dense<0.000000e+00> : vector<128x16xf32>
    %17 = tpu.matmul %15, %16, %cst_4 {dimension_numbers = #tpu.dot_dimension_numbers<[1], [0], [0], [1], [0, 0, 1, 1], [], []>} : vector<128x32xf32>, vector<32x16xf32>, vector<128x16xf32> -> vector<128x16xf32>
    %c0_5 = arith.constant 0 : index
    %c0_6 = arith.constant 0 : index
    %18 = vector.load %arg5[%c0_5, %c0_6] : memref<1x16xf32, #tpu.memory_space<vmem>>, vector<1x16xf32>
    %19 = vector.broadcast %18 : vector<1x16xf32> to vector<128x16xf32>
    %20 = arith.addf %17, %19 : vector<128x16xf32>
    %cst_7 = arith.constant 5.000000e-01 : f32
    %21 = vector.broadcast %cst_7 : f32 to vector<128x16xf32>
    %22 = arith.mulf %21, %20 : vector<128x16xf32>
    %cst_8 = arith.constant 0.707106769 : f32
    %23 = vector.broadcast %cst_8 : f32 to vector<128x16xf32>
    %24 = arith.mulf %20, %23 : vector<128x16xf32>
    %25 = math.erf %24 : vector<128x16xf32>
    %cst_9 = arith.constant 1.000000e+00 : f32
    %26 = vector.broadcast %cst_9 : f32 to vector<128x16xf32>
    %27 = arith.addf %26, %25 : vector<128x16xf32>
    %28 = arith.mulf %22, %27 : vector<128x16xf32>
    %c0_10 = arith.constant 0 : index
    %c0_11 = arith.constant 0 : index
    %29 = vector.load %arg6[%c0_10, %c0_11] : memref<1x16xf32, #tpu.memory_space<vmem>>, vector<1x16xf32>
    %cst_12 = arith.constant dense<0.000000e+00> : vector<1x128xf32>
    %30 = tpu.matmul %29, %28, %cst_12 {dimension_numbers = #tpu.dot_dimension_numbers<[1], [1], [0], [0], [0, 0, 1, 0], [], []>} : vector<1x16xf32>, vector<128x16xf32>, vector<1x128xf32> -> vector<1x128xf32>
    %c0_13 = arith.constant 0 : index
    %c0_14 = arith.constant 0 : index
    %31 = vector.load %arg3[%c0_13, %c0_14] : memref<1x128xi32, #tpu.memory_space<vmem>>, vector<1x128xi32>
    %32 = tpu.iota {dimensions = array<i32: 0>} : vector<8x1xi32>
    %33 = vector.broadcast %32 : vector<8x1xi32> to vector<8x128xi32>
    %34 = vector.broadcast %31 : vector<1x128xi32> to vector<8x128xi32>
    %35 = arith.cmpi eq, %33, %34 : vector<8x128xi32>
    %cst_15 = arith.constant -1.000000e+30 : f32
    %36 = vector.shape_cast %30 : vector<1x128xf32> to vector<1x128xf32>
    %37 = vector.broadcast %36 : vector<1x128xf32> to vector<8x128xf32>
    %38 = vector.broadcast %cst_15 : f32 to vector<8x128xf32>
    %39 = arith.select %35, %37, %38 : vector<8x128xi1>, vector<8x128xf32>
    %cst_16 = arith.constant dense<0xFF800000> : vector<8xf32>
    %40 = vector.multi_reduction <maximumf>, %39, %cst_16 [1] : vector<8x128xf32> to vector<8xf32>
    %41 = vector.shape_cast %40 : vector<8xf32> to vector<8x1xf32>
    %c0_17 = arith.constant 0 : index
    %c0_18 = arith.constant 0 : index
    %42 = vector.load %arg11[%c0_17, %c0_18] : memref<8x1xf32, #tpu.memory_space<vmem>>, vector<8x1xf32>
    %43 = arith.maximumf %42, %41 : vector<8x1xf32>
    %44 = arith.subf %42, %43 : vector<8x1xf32>
    %45 = math.exp %44 : vector<8x1xf32>
    %cst_19 = arith.constant 0.000000e+00 : f32
    %46 = vector.shape_cast %43 : vector<8x1xf32> to vector<8x1xf32>
    %47 = vector.broadcast %46 : vector<8x1xf32> to vector<8x128xf32>
    %48 = vector.broadcast %cst_19 : f32 to vector<8x128xf32>
    %49 = arith.select %35, %47, %48 : vector<8x128xi1>, vector<8x128xf32>
    %cst_20 = arith.constant dense<0.000000e+00> : vector<128xf32>
    %50 = vector.multi_reduction <add>, %49, %cst_20 [0] : vector<8x128xf32> to vector<128xf32>
    %51 = vector.shape_cast %50 : vector<128xf32> to vector<1x128xf32>
    %52 = arith.subf %30, %51 : vector<1x128xf32>
    %53 = math.exp %52 : vector<1x128xf32>
    %cst_21 = arith.constant 0.000000e+00 : f32
    %54 = vector.shape_cast %53 : vector<1x128xf32> to vector<1x128xf32>
    %55 = vector.broadcast %54 : vector<1x128xf32> to vector<8x128xf32>
    %56 = vector.broadcast %cst_21 : f32 to vector<8x128xf32>
    %57 = arith.select %35, %55, %56 : vector<8x128xi1>, vector<8x128xf32>
    %cst_22 = arith.constant dense<0.000000e+00> : vector<8x32xf32>
    %58 = tpu.matmul %57, %15, %cst_22 {dimension_numbers = #tpu.dot_dimension_numbers<[1], [0], [0], [1], [0, 0, 1, 1], [], []>} : vector<8x128xf32>, vector<128x32xf32>, vector<8x32xf32> -> vector<8x32xf32>
    %c0_23 = arith.constant 0 : index
    %c0_24 = arith.constant 0 : index
    %59 = vector.load %arg12[%c0_23, %c0_24] : memref<8x1xf32, #tpu.memory_space<vmem>>, vector<8x1xf32>
    %60 = arith.mulf %45, %59 : vector<8x1xf32>
    %cst_25 = arith.constant dense<0.000000e+00> : vector<8xf32>
    %61 = vector.multi_reduction <add>, %57, %cst_25 [1] : vector<8x128xf32> to vector<8xf32>
    %62 = vector.shape_cast %61 : vector<8xf32> to vector<8x1xf32>
    %63 = arith.addf %60, %62 : vector<8x1xf32>
    %c0_26 = arith.constant 0 : index
    %c0_27 = arith.constant 0 : index
    %64 = vector.load %arg12[%c0_26, %c0_27] : memref<8x1xf32, #tpu.memory_space<vmem>>, vector<8x1xf32>
    tpu.vector_store %arg12[%c0_26, %c0_27], %63 {strides = array<i32>} : memref<8x1xf32, #tpu.memory_space<vmem>>, vector<8x1xf32>,
    %c0_28 = arith.constant 0 : index
    %c0_29 = arith.constant 0 : index
    %65 = vector.load %arg10[%c0_28, %c0_29] : memref<8x32xf32, #tpu.memory_space<vmem>>, vector<8x32xf32>
    %66 = vector.broadcast %45 : vector<8x1xf32> to vector<8x32xf32>
    %67 = arith.mulf %66, %65 : vector<8x32xf32>
    %68 = arith.addf %67, %58 : vector<8x32xf32>
    %c0_30 = arith.constant 0 : index
    %c0_31 = arith.constant 0 : index
    %69 = vector.load %arg10[%c0_30, %c0_31] : memref<8x32xf32, #tpu.memory_space<vmem>>, vector<8x32xf32>
    tpu.vector_store %arg10[%c0_30, %c0_31], %68 {strides = array<i32>} : memref<8x32xf32, #tpu.memory_space<vmem>>, vector<8x32xf32>,
    %c0_32 = arith.constant 0 : index
    %c0_33 = arith.constant 0 : index
    %70 = vector.load %arg11[%c0_32, %c0_33] : memref<8x1xf32, #tpu.memory_space<vmem>>, vector<8x1xf32>
    tpu.vector_store %arg11[%c0_32, %c0_33], %43 {strides = array<i32>} : memref<8x1xf32, #tpu.memory_space<vmem>>, vector<8x1xf32>,
    %c1_i32 = arith.constant 1 : i32
    %71 = arith.cmpi eq, %arg1, %c1_i32 : i32
    %72 = arith.extui %71 : i1 to i32
    %c0_i32_34 = arith.constant 0 : i32
    %73 = arith.cmpi ne, %72, %c0_i32_34 : i32
    scf.if %73 {
      %c0_35 = arith.constant 0 : index
      %c0_36 = arith.constant 0 : index
      %74 = vector.load %arg10[%c0_35, %c0_36] : memref<8x32xf32, #tpu.memory_space<vmem>>, vector<8x32xf32>
      %c0_37 = arith.constant 0 : index
      %c0_38 = arith.constant 0 : index
      %c0_39 = arith.constant 0 : index
      %75 = vector.load %arg7[%c0_37, %c0_38, %c0_39] : memref<1x8x32xf32, #tpu.memory_space<vmem>>, vector<1x8x32xf32>
      %76 = vector.shape_cast %75 : vector<1x8x32xf32> to vector<8x32xf32>
      %77 = vector.shape_cast %74 : vector<8x32xf32> to vector<1x8x32xf32>
      tpu.vector_store %arg7[%c0_37, %c0_38, %c0_39], %77 {strides = array<i32>} : memref<1x8x32xf32, #tpu.memory_space<vmem>>, vector<1x8x32xf32>,
      %c0_40 = arith.constant 0 : index
      %c0_41 = arith.constant 0 : index
      %78 = vector.load %arg11[%c0_40, %c0_41] : memref<8x1xf32, #tpu.memory_space<vmem>>, vector<8x1xf32>
      %c0_42 = arith.constant 0 : index
      %c0_43 = arith.constant 0 : index
      %c0_44 = arith.constant 0 : index
      %79 = vector.load %arg8[%c0_42, %c0_43, %c0_44] : memref<1x8x1xf32, #tpu.memory_space<vmem>>, vector<1x8x1xf32>
      %80 = vector.shape_cast %79 : vector<1x8x1xf32> to vector<8x1xf32>
      %81 = vector.shape_cast %78 : vector<8x1xf32> to vector<1x8x1xf32>
      tpu.vector_store %arg8[%c0_42, %c0_43, %c0_44], %81 {strides = array<i32>} : memref<1x8x1xf32, #tpu.memory_space<vmem>>, vector<1x8x1xf32>,
      %c0_45 = arith.constant 0 : index
      %c0_46 = arith.constant 0 : index
      %82 = vector.load %arg12[%c0_45, %c0_46] : memref<8x1xf32, #tpu.memory_space<vmem>>, vector<8x1xf32>
      %c0_47 = arith.constant 0 : index
      %c0_48 = arith.constant 0 : index
      %c0_49 = arith.constant 0 : index
      %83 = vector.load %arg9[%c0_47, %c0_48, %c0_49] : memref<1x8x1xf32, #tpu.memory_space<vmem>>, vector<1x8x1xf32>
      %84 = vector.shape_cast %83 : vector<1x8x1xf32> to vector<8x1xf32>
      %85 = vector.shape_cast %82 : vector<8x1xf32> to vector<1x8x1xf32>
      tpu.vector_store %arg9[%c0_47, %c0_48, %c0_49], %85 {strides = array<i32>} : memref<1x8x1xf32, #tpu.memory_space<vmem>>, vector<1x8x1xf32>,
    } else {
    }
    return
  }
  func.func @transform_0(%arg0: i32, %arg1: i32) -> (i32, i32) {
    %c2_i32 = arith.constant 2 : i32
    %0 = arith.muli %arg0, %c2_i32 : i32
    %1 = arith.addi %0, %arg1 : i32
    %c2_i32_0 = arith.constant 2 : i32
    %2 = arith.minsi %1, %c2_i32_0 : i32
    %c0_i32 = arith.constant 0 : i32
    %c0_i32_1 = arith.constant 0 : i32
    return %2, %c0_i32 : i32, i32
  }
  func.func @transform_1(%arg0: i32, %arg1: i32) -> (i32, i32) {
    %c2_i32 = arith.constant 2 : i32
    %0 = arith.muli %arg0, %c2_i32 : i32
    %1 = arith.addi %0, %arg1 : i32
    %c0_i32 = arith.constant 0 : i32
    %c0_i32_0 = arith.constant 0 : i32
    return %c0_i32, %1 : i32, i32
  }
  func.func @transform_2(%arg0: i32, %arg1: i32) -> (i32, i32) {
    %c0_i32 = arith.constant 0 : i32
    %c0_i32_0 = arith.constant 0 : i32
    %c0_i32_1 = arith.constant 0 : i32
    return %c0_i32, %c0_i32_0 : i32, i32
  }
  func.func @transform_3(%arg0: i32, %arg1: i32) -> (i32, i32) {
    %c0_i32 = arith.constant 0 : i32
    %c0_i32_0 = arith.constant 0 : i32
    %c0_i32_1 = arith.constant 0 : i32
    return %c0_i32, %c0_i32_0 : i32, i32
  }
  func.func @transform_4(%arg0: i32, %arg1: i32) -> (i32, i32) {
    %c0_i32 = arith.constant 0 : i32
    %c0_i32_0 = arith.constant 0 : i32
    %c0_i32_1 = arith.constant 0 : i32
    return %c0_i32, %c0_i32_0 : i32, i32
  }
  func.func @transform_5(%arg0: i32, %arg1: i32) -> (i32, i32, i32) {
    %c0_i32 = arith.constant 0 : i32
    %c0_i32_0 = arith.constant 0 : i32
    %c0_i32_1 = arith.constant 0 : i32
    return %arg0, %c0_i32, %c0_i32_0 : i32, i32, i32
  }
  func.func @transform_6(%arg0: i32, %arg1: i32) -> (i32, i32, i32) {
    %c0_i32 = arith.constant 0 : i32
    %c0_i32_0 = arith.constant 0 : i32
    %c0_i32_1 = arith.constant 0 : i32
    return %arg0, %c0_i32, %c0_i32_0 : i32, i32, i32
  }
  func.func @transform_7(%arg0: i32, %arg1: i32) -> (i32, i32, i32) {
    %c0_i32 = arith.constant 0 : i32
    %c0_i32_0 = arith.constant 0 : i32
    %c0_i32_1 = arith.constant 0 : i32
    return %arg0, %c0_i32, %c0_i32_0 : i32, i32, i32
  }
}

</mosaic_0001>

<llo_original>
// kernel: tpu_custom_call.1
$region0: #{tpu_custom_call.1}
  #allocation0 [shape = 'u32[]', space=smem, size = 0x4, offset = 0x4, fixed_abs, tag = 'smem constant byte address 0x4 - core index']
  #allocation1 [shape = 'u32[144,128]{1,0:T(1,128)}', space=vmem, size = 0x12000, scoped, tag = 'internal scratch']
  #allocation2 [shape = 'f32[8,32]{1,0:T(8,128)}', space=vmem, size = 0x1000, scoped, tag = 'scratch operand']
  #allocation3 [shape = 'f32[8,1]{1,0:T(8,128)}', space=vmem, size = 0x1000, scoped, tag = 'scratch operand']
  #allocation4 [shape = 'f32[8,1]{1,0:T(8,128)}', space=vmem, size = 0x1000, scoped, tag = 'scratch operand']
  %s0 = inlined_call_operand.vmem [shape: f32[300,32], index: 0, kind: input, shape index: {}]
  %s1 = inlined_call_operand.vmem [shape: s32[1,512], index: 1, kind: input, shape index: {}]
  %s2 = inlined_call_operand.vmem [shape: f32[32,16], index: 2, kind: input, shape index: {}]
  %s3 = inlined_call_operand.vmem [shape: f32[1,16], index: 3, kind: input, shape index: {}]
  %s4 = inlined_call_operand.vmem [shape: f32[1,16], index: 4, kind: input, shape index: {}]
  %s5 = inlined_call_operand.hbm [shape: f32[2,8,32], index: 5, kind: output, shape index: {0}]
  %s6 = inlined_call_operand.vmem [shape: f32[2,8,1], index: 6, kind: output, shape index: {1}]
  %s7 = inlined_call_operand.vmem [shape: f32[2,8,1], index: 7, kind: output, shape index: {2}]
  %8 = xla_tuple %s5, %s6, %s7
  %s9 = sld [smem:[#allocation0]]
  $region77: #{tpu_custom_call.1} parent=0
    _
  %s11 = ssub.s32 1, %s9
  %s12 = scalar_select 0, %s11, %s9
  $region1: #{tpu_custom_call.1} parent=0
    #allocation5 [shape = 'u8[8192]{0}', space=vmem, size = 0x2000, scoped, tag = 'output window, operand 0']
    #allocation6 [shape = 's32[2]{0}', space=sflag, size = 0x8, scoped, tag = 'scoped memory for tpu_custom_call.1']
    %13 = vsyncpa [#allocation6], 0
    %s14 = scalar_lea.sflag [#allocation6], 1
    %15 = vsyncpa %s14, 0
    loop: start=0, step=1, limit=6
    $region2: #{tpu_custom_call.1} parent=1 // loop_pre_header
      _
    $region3: #{tpu_custom_call.1} parent=1 // loop_header
      %s17 = sphi 0, %s21
      %p18 = scmp.ge.s32.totalorder %s17, 6
      %s24 = sphi 0, %s36
      %s25 = sphi 0, %s32
      %s26 = sphi 0, %s24
      %s27 = sphi 0, %s25
      %s28 = sphi 0, %s26
      %s29 = sphi 0, %s27
      %s47 = sphi 0, %s49
      %s50 = sphi 0, %s47
      %s51 = sphi 0, %s50
      %s67 = sphi 0, %s51
      %s77 = sphi 0, %s79
      %s80 = sphi 0, %s77
      %s81 = sphi 0, %s80
      %s97 = sphi 0, %s81
      %s101 = sphi 0, %s101
      %s103 = sphi 0, %s101
      %s104 = sphi 0, %s103
      %s118 = sphi 0, %s104
      %s122 = sphi 0, %s122
      %s124 = sphi 0, %s122
      %s125 = sphi 0, %s124
      %s139 = sphi 0, %s125
      %s143 = sphi 0, %s143
      %s145 = sphi 0, %s143
      %s146 = sphi 0, %s145
      %s160 = sphi 0, %s146
      %s166 = sphi 0, %s168
      %s169 = sphi 0, %s166
      %s170 = sphi 0, %s169
      %s186 = sphi 0, %s170
      %s192 = sphi 0, %s194
      %s195 = sphi 0, %s192
      %s196 = sphi 0, %s195
      %s212 = sphi 0, %s196
      %s218 = sphi 0, %s220
      %s221 = sphi 0, %s218
      %s222 = sphi 0, %s221
      %s238 = sphi 0, %s222
    $region4: #{tpu_custom_call.1} parent=1 // loop_header_branch
      %20 = sbr.rel (%p18) target = $region8
    $region5: #{tpu_custom_call.1} parent=1 // loop_body
      %s22 = ssub.s32 %s17, 1
      %s23 = ssub.s32 %s17, 2
      %s30 = sadd.s32 1, %s25
      %p31 = scmp.ge.s32.totalorder %s30, 2
      %s32 = scalar_select %p31, 0, %s30
      %s33 = sadd.s32 1, %s24
      %s34 = scalar_select %p31, %s33, %s24
      %p35 = scmp.ge.s32.totalorder %s34, 2
      %s36 = scalar_select %p35, 0, %s34
      %s37 = smul.u32 %s24, 2
      %s38 = sadd.s32 %s37, %s25
      %p39 = scmp.lt.s32.totalorder %s38, 2
      %s40 = scalar_select %p39, %s38, 2
      %s41 = smul.u32 %s36, 2
      %s42 = sadd.s32 %s41, %s32
      %p43 = scmp.lt.s32.totalorder %s42, 2
      %s44 = scalar_select %p43, %s42, 2
      %s45 = ssub.s32 %s40, %s44
      %p46 = scmp.eq.s32.totalorder %s45, 0
      %s48 = sadd.s32 %s47, 1
      %s49 = scalar_select %p46, %s47, %s48
      %p52 = pneg %p46
      %p53 = scmp.eq.s32.totalorder %s17, 3
      %p54 = por %p52, %p53
      %p55 = scmp.ne.s32.totalorder %s47, %s50
      %p56 = scmp.eq.s32.totalorder %s17, 0
      %p57 = por %p55, %p56
      %p58 = scmp.ne.s32.totalorder %s47, %s50
      %p59 = scmp.eq.s32.totalorder %s22, 3
      %p60 = por %p58, %p59
      %p61 = scmp.ne.s32.totalorder %s50, %s51
      %p62 = scmp.eq.s32.totalorder %s22, 0
      %p63 = por %p61, %p62
      %p64 = scmp.ne.s32.totalorder %s50, %s51
      %p65 = scmp.eq.s32.totalorder %s23, 3
      %p66 = por %p64, %p65
      %p68 = scmp.ne.s32.totalorder %s51, %s67
      %p69 = scmp.eq.s32.totalorder %s23, 0
      %p70 = por %p68, %p69
      %s71 = smul.u32 %s24, 2
      %s72 = sadd.s32 %s71, %s25
      %s73 = smul.u32 %s36, 2
      %s74 = sadd.s32 %s73, %s32
      %s75 = ssub.s32 %s72, %s74
      %p76 = scmp.eq.s32.totalorder %s75, 0
      %s78 = sadd.s32 %s77, 1
      %s79 = scalar_select %p76, %s77, %s78
      %p82 = pneg %p76
      %p83 = scmp.eq.s32.totalorder %s17, 3
      %p84 = por %p82, %p83
      %p85 = scmp.ne.s32.totalorder %s77, %s80
      %p86 = scmp.eq.s32.totalorder %s17, 0
      %p87 = por %p85, %p86
      %p88 = scmp.ne.s32.totalorder %s77, %s80
      %p89 = scmp.eq.s32.totalorder %s22, 3
      %p90 = por %p88, %p89
      %p91 = scmp.ne.s32.totalorder %s80, %s81
      %p92 = scmp.eq.s32.totalorder %s22, 0
      %p93 = por %p91, %p92
      %p94 = scmp.ne.s32.totalorder %s80, %s81
      %p95 = scmp.eq.s32.totalorder %s23, 3
      %p96 = por %p94, %p95
      %p98 = scmp.ne.s32.totalorder %s81, %s97
      %p99 = scmp.eq.s32.totalorder %s23, 0
      %p100 = por %p98, %p99
      %s102 = sadd.s32 %s101, 1
      %p105 = scmp.eq.s32.totalorder %s17, 3
      %p106 = scmp.ne.s32.totalorder %s101, %s103
      %p107 = scmp.eq.s32.totalorder %s17, 0
      %p108 = por %p106, %p107
      %p109 = scmp.ne.s32.totalorder %s101, %s103
      %p110 = scmp.eq.s32.totalorder %s22, 3
      %p111 = por %p109, %p110
      %p112 = scmp.ne.s32.totalorder %s103, %s104
      %p113 = scmp.eq.s32.totalorder %s22, 0
      %p114 = por %p112, %p113
      %p115 = scmp.ne.s32.totalorder %s103, %s104
      %p116 = scmp.eq.s32.totalorder %s23, 3
      %p117 = por %p115, %p116
      %p119 = scmp.ne.s32.totalorder %s104, %s118
      %p120 = scmp.eq.s32.totalorder %s23, 0
      %p121 = por %p119, %p120
      %s123 = sadd.s32 %s122, 1
      %p126 = scmp.eq.s32.totalorder %s17, 3
      %p127 = scmp.ne.s32.totalorder %s122, %s124
      %p128 = scmp.eq.s32.totalorder %s17, 0
      %p129 = por %p127, %p128
      %p130 = scmp.ne.s32.totalorder %s122, %s124
      %p131 = scmp.eq.s32.totalorder %s22, 3
      %p132 = por %p130, %p131
      %p133 = scmp.ne.s32.totalorder %s124, %s125
      %p134 = scmp.eq.s32.totalorder %s22, 0
      %p135 = por %p133, %p134
      %p136 = scmp.ne.s32.totalorder %s124, %s125
      %p137 = scmp.eq.s32.totalorder %s23, 3
      %p138 = por %p136, %p137
      %p140 = scmp.ne.s32.totalorder %s125, %s139
      %p141 = scmp.eq.s32.totalorder %s23, 0
      %p142 = por %p140, %p141
      %s144 = sadd.s32 %s143, 1
      %p147 = scmp.eq.s32.totalorder %s17, 3
      %p148 = scmp.ne.s32.totalorder %s143, %s145
      %p149 = scmp.eq.s32.totalorder %s17, 0
      %p150 = por %p148, %p149
      %p151 = scmp.ne.s32.totalorder %s143, %s145
      %p152 = scmp.eq.s32.totalorder %s22, 3
      %p153 = por %p151, %p152
      %p154 = scmp.ne.s32.totalorder %s145, %s146
      %p155 = scmp.eq.s32.totalorder %s22, 0
      %p156 = por %p154, %p155
      %p157 = scmp.ne.s32.totalorder %s145, %s146
      %p158 = scmp.eq.s32.totalorder %s23, 3
      %p159 = por %p157, %p158
      %p161 = scmp.ne.s32.totalorder %s146, %s160
      %p162 = scmp.eq.s32.totalorder %s23, 0
      %p163 = por %p161, %p162
      %s164 = ssub.s32 %s24, %s36
      %p165 = scmp.eq.s32.totalorder %s164, 0
      %s167 = sadd.s32 %s166, 1
      %s168 = scalar_select %p165, %s166, %s167
      %p171 = pneg %p165
      %p172 = scmp.eq.s32.totalorder %s17, 3
      %p173 = por %p171, %p172
      %p174 = scmp.ne.s32.totalorder %s166, %s169
      %p175 = scmp.eq.s32.totalorder %s17, 0
      %p176 = por %p174, %p175
      %p177 = scmp.ne.s32.totalorder %s166, %s169
      %p178 = scmp.eq.s32.totalorder %s22, 3
      %p179 = por %p177, %p178
      %p180 = scmp.ne.s32.totalorder %s169, %s170
      %p181 = scmp.eq.s32.totalorder %s22, 0
      %p182 = por %p180, %p181
      %p183 = scmp.ne.s32.totalorder %s169, %s170
      %p184 = scmp.eq.s32.totalorder %s23, 3
      %p185 = por %p183, %p184
      %p187 = scmp.ne.s32.totalorder %s170, %s186
      %p188 = scmp.eq.s32.totalorder %s23, 0
      %p189 = por %p187, %p188
      %s190 = ssub.s32 %s24, %s36
      %p191 = scmp.eq.s32.totalorder %s190, 0
      %s193 = sadd.s32 %s192, 1
      %s194 = scalar_select %p191, %s192, %s193
      %p197 = pneg %p191
      %p198 = scmp.eq.s32.totalorder %s17, 3
      %p199 = por %p197, %p198
      %p200 = scmp.ne.s32.totalorder %s192, %s195
      %p201 = scmp.eq.s32.totalorder %s17, 0
      %p202 = por %p200, %p201
      %p203 = scmp.ne.s32.totalorder %s192, %s195
      %p204 = scmp.eq.s32.totalorder %s22, 3
      %p205 = por %p203, %p204
      %p206 = scmp.ne.s32.totalorder %s195, %s196
      %p207 = scmp.eq.s32.totalorder %s22, 0
      %p208 = por %p206, %p207
      %p209 = scmp.ne.s32.totalorder %s195, %s196
      %p210 = scmp.eq.s32.totalorder %s23, 3
      %p211 = por %p209, %p210
      %p213 = scmp.ne.s32.totalorder %s196, %s212
      %p214 = scmp.eq.s32.totalorder %s23, 0
      %p215 = por %p213, %p214
      %s216 = ssub.s32 %s24, %s36
      %p217 = scmp.eq.s32.totalorder %s216, 0
      %s219 = sadd.s32 %s218, 1
      %s220 = scalar_select %p217, %s218, %s219
      %p223 = pneg %p217
      %p224 = scmp.eq.s32.totalorder %s17, 3
      %p225 = por %p223, %p224
      %p226 = scmp.ne.s32.totalorder %s218, %s221
      %p227 = scmp.eq.s32.totalorder %s17, 0
      %p228 = por %p226, %p227
      %p229 = scmp.ne.s32.totalorder %s218, %s221
      %p230 = scmp.eq.s32.totalorder %s22, 3
      %p231 = por %p229, %p230
      %p232 = scmp.ne.s32.totalorder %s221, %s222
      %p233 = scmp.eq.s32.totalorder %s22, 0
      %p234 = por %p232, %p233
      %p235 = scmp.ne.s32.totalorder %s221, %s222
      %p236 = scmp.eq.s32.totalorder %s23, 3
      %p237 = por %p235, %p236
      %p239 = scmp.ne.s32.totalorder %s222, %s238
      %p240 = scmp.eq.s32.totalorder %s23, 0
      %p241 = por %p239, %p240
      %p242 = scmp.le.s32.totalorder 1, %s17
      %p243 = scmp.lt.s32.totalorder %s17, 5
      %p244 = pnand %p242, %p243
      %p245 = pneg %p244
      // Predicated region
      $region9: #{tpu_custom_call.1} parent=5 // pred_check
        _
      $region10: #{tpu_custom_call.1} parent=5 // pred_check_branch
        %247 = sbr.rel (%p244) target = $region12
      $region11: #{tpu_custom_call.1} parent=5 // pred_region
        %s248 = ssub.s32 %s17, 1
        // Predicated region
        $region13: #{tpu_custom_call.1} parent=11 // pred_check
          %p249 = pneg %p114
        $region14: #{tpu_custom_call.1} parent=11 // pred_check_branch
          %251 = sbr.rel (%p249) target = $region16
        $region15: #{tpu_custom_call.1} parent=11 // pred_region
          _
        $region16: #{tpu_custom_call.1} parent=11 // pred_fallthru
          _
        // Predicated region
        $region17: #{tpu_custom_call.1} parent=11 // pred_check
          %p252 = pneg %p135
        $region18: #{tpu_custom_call.1} parent=11 // pred_check_branch
          %254 = sbr.rel (%p252) target = $region20
        $region19: #{tpu_custom_call.1} parent=11 // pred_region
          _
        $region20: #{tpu_custom_call.1} parent=11 // pred_fallthru
          _
        // Predicated region
        $region21: #{tpu_custom_call.1} parent=11 // pred_check
          %p255 = pneg %p156
        $region22: #{tpu_custom_call.1} parent=11 // pred_check_branch
          %257 = sbr.rel (%p255) target = $region24
        $region23: #{tpu_custom_call.1} parent=11 // pred_region
          _
        $region24: #{tpu_custom_call.1} parent=11 // pred_fallthru
          _
      $region12: #{tpu_custom_call.1} parent=5 // pred_fallthru
        _
      %p258 = scmp.lt.s32.totalorder %s17, 4
      // Predicated region
      $region25: #{tpu_custom_call.1} parent=5 // pred_check
        %p259 = pneg %p258
      $region26: #{tpu_custom_call.1} parent=5 // pred_check_branch
        %261 = sbr.rel (%p259) target = $region28
      $region27: #{tpu_custom_call.1} parent=5 // pred_region
        // Predicated region
        $region29: #{tpu_custom_call.1} parent=27 // pred_check
          %p262 = pneg %p57
        $region30: #{tpu_custom_call.1} parent=27 // pred_check_branch
          %264 = sbr.rel (%p262) target = $region32
        $region31: #{tpu_custom_call.1} parent=27 // pred_region
          %s265 = smul.u32 %s24, 2
          %s266 = sadd.s32 %s265, %s25
          %p267 = scmp.lt.s32.totalorder %s266, 2
          %s268 = scalar_select %p267, %s266, 2
          %s269 = smul.u32 16, %s268
          %s270 = ssub.s32 38, %s269
          %p271 = scmp.lt.s32.totalorder %s270, 16
          %s272 = scalar_select %p271, %s270, 16
          %s273 = smul.u32 128, %s272
          %p274 = scmp.lt.s32.totalorder %s269, 37
          %s275 = scalar_select %p274, %s269, 37
          %s276 = smul.addr %s275, 8
          %s277 = scalar_lea.vmem %s0, %s276
          %s278 = smul.u32 %s24, 2
          %s279 = sadd.s32 %s278, %s25
          %p280 = scmp.lt.s32.totalorder %s279, 2
          %s281 = scalar_select %p280, %s279, 2
          %s282 = smul.u32 16, %s281
          %s283 = ssub.s32 38, %s282
          %p284 = scmp.lt.s32.totalorder %s283, 16
          %s285 = scalar_select %p284, %s283, 16
          %s286 = smul.u32 128, %s285
        $region32: #{tpu_custom_call.1} parent=27 // pred_fallthru
          _
        // Predicated region
        $region33: #{tpu_custom_call.1} parent=27 // pred_check
          %p287 = pneg %p87
        $region34: #{tpu_custom_call.1} parent=27 // pred_check_branch
          %289 = sbr.rel (%p287) target = $region36
        $region35: #{tpu_custom_call.1} parent=27 // pred_region
          %s290 = smul.u32 %s24, 2
          %s291 = sadd.s32 %s290, %s25
          %p292 = scmp.lt.s32.totalorder %s291, 3
          %s293 = scalar_select %p292, %s291, 3
          %s294 = scalar_lea.vmem %s1, %s293
          %s295 = smul.u32 %s24, 2
          %s296 = sadd.s32 %s295, %s25
        $region36: #{tpu_custom_call.1} parent=27 // pred_fallthru
          _
      $region28: #{tpu_custom_call.1} parent=5 // pred_fallthru
        _
      %p297 = scmp.le.s32.totalorder 1, %s17
      %p298 = scmp.lt.s32.totalorder %s17, 5
      %p299 = pnand %p297, %p298
      %p300 = pneg %p299
      // Predicated region
      $region37: #{tpu_custom_call.1} parent=5 // pred_check
        _
      $region38: #{tpu_custom_call.1} parent=5 // pred_check_branch
        %302 = sbr.rel (%p299) target = $region40
      $region39: #{tpu_custom_call.1} parent=5 // pred_region
        %s303 = ssub.s32 %s17, 1
        %s304 = smul.u32 %s26, 2
        %s305 = sadd.s32 %s304, %s27
        %p306 = scmp.lt.s32.totalorder %s305, 2
        %s307 = scalar_select %p306, %s305, 2
        %s308 = smul.u32 16, %s307
        %s309 = ssub.s32 38, %s308
        %p310 = scmp.lt.s32.totalorder %s309, 16
        %s311 = scalar_select %p310, %s309, 16
        %s312 = smul.u32 128, %s311
        %p313 = scmp.lt.s32.totalorder %s308, 37
        %s314 = scalar_select %p313, %s308, 37
        %s315 = smul.addr %s314, 8
        %s316 = scalar_lea.vmem %s0, %s315
        %p317 = pneg %p63
        %p318 = pneg %p60
        %s319 = smul.u32 %s26, 2
        %s320 = sadd.s32 %s319, %s27
        %p321 = scmp.lt.s32.totalorder %s320, 3
        %s322 = scalar_select %p321, %s320, 3
        %s323 = scalar_lea.vmem %s1, %s322
        %p324 = pneg %p93
        %p325 = pneg %p90
        %p326 = pneg %p114
        %p327 = pneg %p111
        %p328 = pneg %p135
        %p329 = pneg %p132
        %p330 = pneg %p156
        %p331 = pneg %p153
        %p332 = pneg %p182
        %p333 = pneg %p179
        %s334 = sand.u32 %s169, 1
        %s335 = scalar_lea.sflag [#allocation6], %s334
        %s336 = sand.u32 %s169, 1
        %s337 = smul.addr %s336, 8
        %s338 = scalar_lea.vmem [#allocation5], %s337
        %p339 = pneg %p208
        %p340 = pneg %p205
        %p341 = scmp.lt.s32.totalorder %s26, 1
        %s342 = scalar_select %p341, %s26, 1
        %s343 = smul.addr %s342, 8
        %s344 = scalar_lea.vmem %s6, %s343
        %p345 = pneg %p234
        %p346 = pneg %p231
        %p347 = scmp.lt.s32.totalorder %s26, 1
        %s348 = scalar_select %p347, %s26, 1
        %s349 = smul.addr %s348, 8
        %s350 = scalar_lea.vmem %s7, %s349
        %s351 = smul.u32 %s26, 2
        %s352 = sadd.s32 %s351, %s27
        %p353 = scmp.lt.s32.totalorder %s352, 2
        %s354 = scalar_select %p353, %s352, 2
        %s355 = smul.u32 16, %s354
        %s356 = ssub.s32 38, %s355
        %p357 = scmp.lt.s32.totalorder %s356, 16
        %s358 = scalar_select %p357, %s356, 16
        %s359 = smul.u32 128, %s358
        %p360 = scmp.lt.s32.totalorder %s355, 37
        %s361 = scalar_select %p360, %s355, 37
        %s362 = smul.addr %s361, 8
        %s363 = scalar_lea.vmem %s0, %s362
        %s364 = smul.u32 %s26, 2
        %s365 = sadd.s32 %s364, %s27
        %p366 = scmp.lt.s32.totalorder %s365, 2
        %s367 = scalar_select %p366, %s365, 2
        %s368 = smul.u32 16, %s367
        %s369 = ssub.s32 38, %s368
        %p370 = scmp.lt.s32.totalorder %s369, 16
        %s371 = scalar_select %p370, %s369, 16
        %s372 = smul.u32 128, %s371
        %s373 = smul.u32 %s26, 2
        %s374 = sadd.s32 %s373, %s27
        %p375 = scmp.lt.s32.totalorder %s374, 3
        %s376 = scalar_select %p375, %s374, 3
        %s377 = scalar_lea.vmem %s1, %s376
        %s378 = smul.u32 %s26, 2
        %s379 = sadd.s32 %s378, %s27
        %p380 = scmp.lt.s32.totalorder %s26, 1
        %s381 = scalar_select %p380, %s26, 1
        %s382 = smul.addr %s381, 8
        %s383 = scalar_lea.vmem %s6, %s382
        %p384 = scmp.lt.s32.totalorder %s26, 1
        %s385 = scalar_select %p384, %s26, 1
        %s386 = smul.addr %s385, 8
        %s387 = scalar_lea.vmem %s7, %s386
        %p388 = scmp.eq.s32.totalorder %s27, 0
        // Predicated region
        $region41: #{tpu_custom_call.1} parent=39 // pred_check
          %p389 = pneg %p388
        $region42: #{tpu_custom_call.1} parent=39 // pred_check_branch
          %391 = sbr.rel (%p389) target = $region44
        $region43: #{tpu_custom_call.1} parent=39 // pred_region
          %vm392 = vcmask 261120
          %393 = vst.msk [vmem:[#allocation2] sm:$0xff] %vm392, 0.0
          %vm394 = vcmask 7168
          %395 = vst.msk [vmem:[#allocation3] sm:$0xff] %vm394, -1e+30
          %396 = vst.msk [vmem:[#allocation4] sm:$0xff] %vm394, 0.0
        $region44: #{tpu_custom_call.1} parent=39 // pred_fallthru
          _
        %s397 = smul.u32 %s26, 2
        %s398 = sadd.s32 %s397, %s27
        %s399 = smul.u32 %s398, 128
        %v400 = vlaneseq
        %v401 = vshrl.u32 %v400, 7
        %v402 = vadd.s32 %v401, 8
        %v403 = vadd.s32 %v401, 16
        %v404 = vadd.s32 %v401, 24
        %v405 = vadd.s32 %v401, 32
        %v406 = vadd.s32 %v401, 40
        %v407 = vadd.s32 %v401, 48
        %v408 = vadd.s32 %v401, 56
        %v409 = vadd.s32 %v401, 64
        %v410 = vadd.s32 %v401, 72
        %v411 = vadd.s32 %v401, 80
        %v412 = vadd.s32 %v401, 88
        %v413 = vadd.s32 %v401, 96
        %v414 = vadd.s32 %v401, 104
        %v415 = vadd.s32 %v401, 112
        %v416 = vadd.s32 %v401, 120
        %v417 = vstv %s399
        %v418 = vadd.s32 %v401, %v417
        %v419 = vadd.s32 %v402, %v417
        %v420 = vadd.s32 %v403, %v417
        %v421 = vadd.s32 %v404, %v417
        %v422 = vadd.s32 %v405, %v417
        %v423 = vadd.s32 %v406, %v417
        %v424 = vadd.s32 %v407, %v417
        %v425 = vadd.s32 %v408, %v417
        %v426 = vadd.s32 %v409, %v417
        %v427 = vadd.s32 %v410, %v417
        %v428 = vadd.s32 %v411, %v417
        %v429 = vadd.s32 %v412, %v417
        %v430 = vadd.s32 %v413, %v417
        %v431 = vadd.s32 %v414, %v417
        %v432 = vadd.s32 %v415, %v417
        %v433 = vadd.s32 %v416, %v417
        %vm434 = vcmp.lt.s32.totalorder %v418, 300
        %vm435 = vcmp.lt.s32.totalorder %v419, 300
        %vm436 = vcmp.lt.s32.totalorder %v420, 300
        %vm437 = vcmp.lt.s32.totalorder %v421, 300
        %vm438 = vcmp.lt.s32.totalorder %v422, 300
        %vm439 = vcmp.lt.s32.totalorder %v423, 300
        %vm440 = vcmp.lt.s32.totalorder %v424, 300
        %vm441 = vcmp.lt.s32.totalorder %v425, 300
        %vm442 = vcmp.lt.s32.totalorder %v426, 300
        %vm443 = vcmp.lt.s32.totalorder %v427, 300
        %vm444 = vcmp.lt.s32.totalorder %v428, 300
        %vm445 = vcmp.lt.s32.totalorder %v429, 300
        %vm446 = vcmp.lt.s32.totalorder %v430, 300
        %vm447 = vcmp.lt.s32.totalorder %v431, 300
        %vm448 = vcmp.lt.s32.totalorder %v432, 300
        %vm449 = vcmp.lt.s32.totalorder %v433, 300
        %v450 = vld [vmem:[%s363] sm:$0xff]
        %v451 = vld [vmem:[%s363 + $0x8] sm:$0xff]
        %v452 = vld [vmem:[%s363 + $0x10] sm:$0xff]
        %v453 = vld [vmem:[%s363 + $0x18] sm:$0xff]
        %v454 = vld [vmem:[%s363 + $0x20] sm:$0xff]
        %v455 = vld [vmem:[%s363 + $0x28] sm:$0xff]
        %v456 = vld [vmem:[%s363 + $0x30] sm:$0xff]
        %v457 = vld [vmem:[%s363 + $0x38] sm:$0xff]
        %v458 = vld [vmem:[%s363 + $0x40] sm:$0xff]
        %v459 = vld [vmem:[%s363 + $0x48] sm:$0xff]
        %v460 = vld [vmem:[%s363 + $0x50] sm:$0xff]
        %v461 = vld [vmem:[%s363 + $0x58] sm:$0xff]
        %v462 = vld [vmem:[%s363 + $0x60] sm:$0xff]
        %v463 = vld [vmem:[%s363 + $0x68] sm:$0xff]
        %v464 = vld [vmem:[%s363 + $0x70] sm:$0xff]
        %v465 = vld [vmem:[%s363 + $0x78] sm:$0xff]
        %v466 = vsel %vm434, 1, 0
        %v467 = vsel %vm435, 1, 0
        %v468 = vsel %vm436, 1, 0
        %v469 = vsel %vm437, 1, 0
        %v470 = vsel %vm438, 1, 0
        %v471 = vsel %vm439, 1, 0
        %v472 = vsel %vm440, 1, 0
        %v473 = vsel %vm441, 1, 0
        %v474 = vsel %vm442, 1, 0
        %v475 = vsel %vm443, 1, 0
        %v476 = vsel %vm444, 1, 0
        %v477 = vsel %vm445, 1, 0
        %v478 = vsel %vm446, 1, 0
        %v479 = vsel %vm447, 1, 0
        %v480 = vsel %vm448, 1, 0
        %v481 = vsel %vm449, 1, 0
        %vm482 = vcmp.eq.s32.totalorder %v466, 1
        %vm483 = vcmp.eq.s32.totalorder %v467, 1
        %vm484 = vcmp.eq.s32.totalorder %v468, 1
        %vm485 = vcmp.eq.s32.totalorder %v469, 1
        %vm486 = vcmp.eq.s32.totalorder %v470, 1
        %vm487 = vcmp.eq.s32.totalorder %v471, 1
        %vm488 = vcmp.eq.s32.totalorder %v472, 1
        %vm489 = vcmp.eq.s32.totalorder %v473, 1
        %vm490 = vcmp.eq.s32.totalorder %v474, 1
        %vm491 = vcmp.eq.s32.totalorder %v475, 1
        %vm492 = vcmp.eq.s32.totalorder %v476, 1
        %vm493 = vcmp.eq.s32.totalorder %v477, 1
        %vm494 = vcmp.eq.s32.totalorder %v478, 1
        %vm495 = vcmp.eq.s32.totalorder %v479, 1
        %vm496 = vcmp.eq.s32.totalorder %v480, 1
        %vm497 = vcmp.eq.s32.totalorder %v481, 1
        %v498 = vsel %vm482, %v450, 0.0
        %v499 = vsel %vm483, %v451, 0.0
        %v500 = vsel %vm484, %v452, 0.0
        %v501 = vsel %vm485, %v453, 0.0
        %v502 = vsel %vm486, %v454, 0.0
        %v503 = vsel %vm487, %v455, 0.0
        %v504 = vsel %vm488, %v456, 0.0
        %v505 = vsel %vm489, %v457, 0.0
        %v506 = vsel %vm490, %v458, 0.0
        %v507 = vsel %vm491, %v459, 0.0
        %v508 = vsel %vm492, %v460, 0.0
        %v509 = vsel %vm493, %v461, 0.0
        %v510 = vsel %vm494, %v462, 0.0
        %v511 = vsel %vm495, %v463, 0.0
        %v512 = vsel %vm496, %v464, 0.0
        %v513 = vsel %vm497, %v465, 0.0
        %v514 = vld [vmem:[%s2] sm:$0xff]
        %v515 = vld [vmem:[%s2 + $0x8] sm:$0xff]
        %v516 = vld [vmem:[%s2 + $0x10] sm:$0xff]
        %v517 = vld [vmem:[%s2 + $0x18] sm:$0xff]
        %v518 = vld [vmem:[%s3] sm:$0x1]
        %v520 = vlaneseq
        %v521 = vshrl.u32 %v520, 7
        %v522 = vsub.s32 0, %v521
        %v523 = vrot.slane %v518, %v522
        %vm525 = vcmask 261120
        %v527 = vsel %vm525, %v498, 0
        %v530 = vsel %vm525, %v499, 0
        %v533 = vsel %vm525, %v500, 0
        %v536 = vsel %vm525, %v501, 0
        %v539 = vsel %vm525, %v502, 0
        %v542 = vsel %vm525, %v503, 0
        %v545 = vsel %vm525, %v504, 0
        %v548 = vsel %vm525, %v505, 0
        %v551 = vsel %vm525, %v506, 0
        %v554 = vsel %vm525, %v507, 0
        %v557 = vsel %vm525, %v508, 0
        %v560 = vsel %vm525, %v509, 0
        %v563 = vsel %vm525, %v510, 0
        %v566 = vsel %vm525, %v511, 0
        %v569 = vsel %vm525, %v512, 0
        %v572 = vsel %vm525, %v513, 0
        %574 = vmatprep.subr.mxu0 0.0
        %575 = vmatpush1.msra.mxu0 0.0
        %576 = vmatprep.subr.mxu0 0.0
        %577 = vmatpush1.msra.mxu0 0.0
        %578 = vmatprep.subr.mxu0 0.0
        %579 = vmatpush1.msra.mxu0 0.0
        %580 = vmatprep.subr.mxu0 0.0
        %581 = vmatpush1.msra.mxu0 0.0
        %582 = vmatprep.subr.mxu0 0.0
        %583 = vmatpush1.msra.mxu0 0.0
        %584 = vmatprep.subr.mxu0 0.0
        %585 = vmatpush1.msra.mxu0 0.0
        %586 = vmatprep.subr.mxu0 0.0
        %587 = vmatpush1.msra.mxu0 0.0
        %588 = vmatprep.subr.mxu0 0.0
        %589 = vmatpush1.msra.mxu0 0.0
        %590 = vmatprep.subr.mxu0 0.0
        %591 = vmatpush1.msra.mxu0 0.0
        %592 = vmatprep.subr.mxu0 0.0
        %593 = vmatpush1.msra.mxu0 0.0
        %594 = vmatprep.subr.mxu0 0.0
        %595 = vmatpush1.msra.mxu0 0.0
        %596 = vmatprep.subr.mxu0 0.0
        %597 = vmatpush1.msra.mxu0 0.0
        %598 = vmatprep.subr.mxu0 0.0
        %599 = vmatpush1.msra.mxu0 %v517
        %600 = vmatprep.subr.mxu0 0.0
        %601 = vmatpush1.msra.mxu0 %v516
        %602 = vmatprep.subr.mxu0 0.0
        %603 = vmatpush1.msra.mxu0 %v515
        %604 = vmatprep.subr.mxu0 0.0
        %605 = vmatpush1.msra.mxu0 %v514
        %606 = vmatprep.subr.mxu0 0.0
        %607 = vmatpush2.msra.mxu0 0.0
        %608 = vmatprep.subr.mxu0 0.0
        %609 = vmatpush2.msra.mxu0 0.0
        %610 = vmatprep.subr.mxu0 0.0
        %611 = vmatpush2.msra.mxu0 0.0
        %612 = vmatprep.subr.mxu0 0.0
        %613 = vmatpush2.msra.mxu0 0.0
        %614 = vmatprep.subr.mxu0 0.0
        %615 = vmatpush2.msra.mxu0 0.0
        %616 = vmatprep.subr.mxu0 0.0
        %617 = vmatpush2.msra.mxu0 0.0
        %618 = vmatprep.subr.mxu0 0.0
        %619 = vmatpush2.msra.mxu0 0.0
        %620 = vmatprep.subr.mxu0 0.0
        %621 = vmatpush2.msra.mxu0 0.0
        %622 = vmatprep.subr.mxu0 0.0
        %623 = vmatpush2.msra.mxu0 0.0
        %624 = vmatprep.subr.mxu0 0.0
        %625 = vmatpush2.msra.mxu0 0.0
        %626 = vmatprep.subr.mxu0 0.0
        %627 = vmatpush2.msra.mxu0 0.0
        %628 = vmatprep.subr.mxu0 0.0
        %629 = vmatpush2.msra.mxu0 0.0
        %630 = vmatprep.subr.mxu0 0.0
        %631 = vmatpush2.msra.mxu0 0.0
        %632 = vmatprep.subr.mxu0 0.0
        %633 = vmatpush2.msra.mxu0 0.0
        %634 = vmatprep.subr.mxu0 0.0
        %635 = vmatpush2.msra.mxu0 0.0
        %636 = vmatprep.subr.mxu0 0.0
        %637 = vmatpush2.msra.mxu0 0.0
        %638 = vmatprep.mubr.f32.mxu0 0.0
        %639 = vmatmul.mubr.f32.gmra.mxu0 %v527
        %v640 = vpop.f32.mrf.mxu0
        %v641 = vadd.f32 %v523, %v640
        %v642 = vpop.f32.mrf.mxu0
        %643 = vmatprep.mubr.f32.mxu0 0.0
        %644 = vmatmul.mubr.f32.gmra.mxu0 %v530
        %v645 = vpop.f32.mrf.mxu0
        %v646 = vadd.f32 %v523, %v645
        %v647 = vpop.f32.mrf.mxu0
        %648 = vmatprep.mubr.f32.mxu0 0.0
        %649 = vmatmul.mubr.f32.gmra.mxu0 %v533
        %v650 = vpop.f32.mrf.mxu0
        %v651 = vadd.f32 %v523, %v650
        %v652 = vpop.f32.mrf.mxu0
        %653 = vmatprep.mubr.f32.mxu0 0.0
        %654 = vmatmul.mubr.f32.gmra.mxu0 %v536
        %v655 = vpop.f32.mrf.mxu0
        %v656 = vadd.f32 %v523, %v655
        %v657 = vpop.f32.mrf.mxu0
        %658 = vmatprep.mubr.f32.mxu0 0.0
        %659 = vmatmul.mubr.f32.gmra.mxu0 %v539
        %v660 = vpop.f32.mrf.mxu0
        %v661 = vadd.f32 %v523, %v660
        %v662 = vpop.f32.mrf.mxu0
        %663 = vmatprep.mubr.f32.mxu0 0.0
        %664 = vmatmul.mubr.f32.gmra.mxu0 %v542
        %v665 = vpop.f32.mrf.mxu0
        %v666 = vadd.f32 %v523, %v665
        %v667 = vpop.f32.mrf.mxu0
        %668 = vmatprep.mubr.f32.mxu0 0.0
        %669 = vmatmul.mubr.f32.gmra.mxu0 %v545
        %v670 = vpop.f32.mrf.mxu0
        %v671 = vadd.f32 %v523, %v670
        %v672 = vpop.f32.mrf.mxu0
        %673 = vmatprep.mubr.f32.mxu0 0.0
        %674 = vmatmul.mubr.f32.gmra.mxu0 %v548
        %v675 = vpop.f32.mrf.mxu0
        %v676 = vadd.f32 %v523, %v675
        %v677 = vpop.f32.mrf.mxu0
        %678 = vmatprep.mubr.f32.mxu0 0.0
        %679 = vmatmul.mubr.f32.gmra.mxu0 %v551
        %v680 = vpop.f32.mrf.mxu0
        %v681 = vadd.f32 %v523, %v680
        %v682 = vpop.f32.mrf.mxu0
        %683 = vmatprep.mubr.f32.mxu0 0.0
        %684 = vmatmul.mubr.f32.gmra.mxu0 %v554
        %v685 = vpop.f32.mrf.mxu0
        %v686 = vadd.f32 %v523, %v685
        %v687 = vpop.f32.mrf.mxu0
        %688 = vmatprep.mubr.f32.mxu0 0.0
        %689 = vmatmul.mubr.f32.gmra.mxu0 %v557
        %v690 = vpop.f32.mrf.mxu0
        %v691 = vadd.f32 %v523, %v690
        %v692 = vpop.f32.mrf.mxu0
        %693 = vmatprep.mubr.f32.mxu0 0.0
        %694 = vmatmul.mubr.f32.gmra.mxu0 %v560
        %v695 = vpop.f32.mrf.mxu0
        %v696 = vadd.f32 %v523, %v695
        %v697 = vpop.f32.mrf.mxu0
        %698 = vmatprep.mubr.f32.mxu0 0.0
        %699 = vmatmul.mubr.f32.gmra.mxu0 %v563
        %v700 = vpop.f32.mrf.mxu0
        %v701 = vadd.f32 %v523, %v700
        %v702 = vpop.f32.mrf.mxu0
        %703 = vmatprep.mubr.f32.mxu0 0.0
        %704 = vmatmul.mubr.f32.gmra.mxu0 %v566
        %v705 = vpop.f32.mrf.mxu0
        %v706 = vadd.f32 %v523, %v705
        %v707 = vpop.f32.mrf.mxu0
        %708 = vmatprep.mubr.f32.mxu0 0.0
        %709 = vmatmul.mubr.f32.gmra.mxu0 %v569
        %v710 = vpop.f32.mrf.mxu0
        %v711 = vadd.f32 %v523, %v710
        %v712 = vpop.f32.mrf.mxu0
        %713 = vmatprep.mubr.f32.mxu0 0.0
        %714 = vmatmul.mubr.f32.gmra.mxu0 %v572
        %v715 = vpop.f32.mrf.mxu0
        %v716 = vadd.f32 %v523, %v715
        %v717 = vpop.f32.mrf.mxu0
        %718 = vdwg.mxu0
        %v719 = vmul.f32 %v641, 0.5
        %v720 = vmul.f32 %v646, 0.5
        %v721 = vmul.f32 %v651, 0.5
        %v722 = vmul.f32 %v656, 0.5
        %v723 = vmul.f32 %v661, 0.5
        %v724 = vmul.f32 %v666, 0.5
        %v725 = vmul.f32 %v671, 0.5
        %v726 = vmul.f32 %v676, 0.5
        %v727 = vmul.f32 %v681, 0.5
        %v728 = vmul.f32 %v686, 0.5
        %v729 = vmul.f32 %v691, 0.5
        %v730 = vmul.f32 %v696, 0.5
        %v731 = vmul.f32 %v701, 0.5
        %v732 = vmul.f32 %v706, 0.5
        %v733 = vmul.f32 %v711, 0.5
        %v734 = vmul.f32 %v716, 0.5
        %v735 = vmul.f32 %v641, 0.70710677
        %v736 = vmul.f32 %v646, 0.70710677
        %v737 = vmul.f32 %v651, 0.70710677
        %v738 = vmul.f32 %v656, 0.70710677
        %v739 = vmul.f32 %v661, 0.70710677
        %v740 = vmul.f32 %v666, 0.70710677
        %v741 = vmul.f32 %v671, 0.70710677
        %v742 = vmul.f32 %v676, 0.70710677
        %v743 = vmul.f32 %v681, 0.70710677
        %v744 = vmul.f32 %v686, 0.70710677
        %v745 = vmul.f32 %v691, 0.70710677
        %v746 = vmul.f32 %v696, 0.70710677
        %v747 = vmul.f32 %v701, 0.70710677
        %v748 = vmul.f32 %v706, 0.70710677
        %v749 = vmul.f32 %v711, 0.70710677
        %v750 = vmul.f32 %v716, 0.70710677
        %v751 = verf.f32.pop %v735
        %v752 = verf.f32.pop %v736
        %v753 = verf.f32.pop %v737
        %v754 = verf.f32.pop %v738
        %v755 = verf.f32.pop %v739
        %v756 = verf.f32.pop %v740
        %v757 = verf.f32.pop %v741
        %v758 = verf.f32.pop %v742
        %v759 = verf.f32.pop %v743
        %v760 = verf.f32.pop %v744
        %v761 = verf.f32.pop %v745
        %v762 = verf.f32.pop %v746
        %v763 = verf.f32.pop %v747
        %v764 = verf.f32.pop %v748
        %v765 = verf.f32.pop %v749
        %v766 = verf.f32.pop %v750
        %v767 = vadd.f32 %v751, 1.0
        %v768 = vadd.f32 %v752, 1.0
        %v769 = vadd.f32 %v753, 1.0
        %v770 = vadd.f32 %v754, 1.0
        %v771 = vadd.f32 %v755, 1.0
        %v772 = vadd.f32 %v756, 1.0
        %v773 = vadd.f32 %v757, 1.0
        %v774 = vadd.f32 %v758, 1.0
        %v775 = vadd.f32 %v759, 1.0
        %v776 = vadd.f32 %v760, 1.0
        %v777 = vadd.f32 %v761, 1.0
        %v778 = vadd.f32 %v762, 1.0
        %v779 = vadd.f32 %v763, 1.0
        %v780 = vadd.f32 %v764, 1.0
        %v781 = vadd.f32 %v765, 1.0
        %v782 = vadd.f32 %v766, 1.0
        %v783 = vmul.f32 %v719, %v767
        %v784 = vmul.f32 %v720, %v768
        %v785 = vmul.f32 %v721, %v769
        %v786 = vmul.f32 %v722, %v770
        %v787 = vmul.f32 %v723, %v771
        %v788 = vmul.f32 %v724, %v772
        %v789 = vmul.f32 %v725, %v773
        %v790 = vmul.f32 %v726, %v774
        %v791 = vmul.f32 %v727, %v775
        %v792 = vmul.f32 %v728, %v776
        %v793 = vmul.f32 %v729, %v777
        %v794 = vmul.f32 %v730, %v778
        %v795 = vmul.f32 %v731, %v779
        %v796 = vmul.f32 %v732, %v780
        %v797 = vmul.f32 %v733, %v781
        %v798 = vmul.f32 %v734, %v782
        %v799 = vld [vmem:[%s4] sm:$0x1]
        %vm800 = vcmask 130048
        %v802 = vsel %vm800, %v799, 0
        %v805 = vsel %vm800, %v783, 0
        %v808 = vsel %vm800, %v784, 0
        %v811 = vsel %vm800, %v785, 0
        %v814 = vsel %vm800, %v786, 0
        %v817 = vsel %vm800, %v787, 0
        %v820 = vsel %vm800, %v788, 0
        %v823 = vsel %vm800, %v789, 0
        %v826 = vsel %vm800, %v790, 0
        %v829 = vsel %vm800, %v791, 0
        %v832 = vsel %vm800, %v792, 0
        %v835 = vsel %vm800, %v793, 0
        %v838 = vsel %vm800, %v794, 0
        %v841 = vsel %vm800, %v795, 0
        %v844 = vsel %vm800, %v796, 0
        %v847 = vsel %vm800, %v797, 0
        %v850 = vsel %vm800, %v798, 0
        %852 = vmatprep.subr.mxu0 0.0
        %853 = vmatpush1.xpose.msra.mxu0 %v850
        %854 = vmatprep.subr.mxu0 0.0
        %855 = vmatpush1.xpose.msra.mxu0 %v847
        %856 = vmatprep.subr.mxu0 0.0
        %857 = vmatpush1.xpose.msra.mxu0 %v844
        %858 = vmatprep.subr.mxu0 0.0
        %859 = vmatpush1.xpose.msra.mxu0 %v841
        %860 = vmatprep.subr.mxu0 0.0
        %861 = vmatpush1.xpose.msra.mxu0 %v838
        %862 = vmatprep.subr.mxu0 0.0
        %863 = vmatpush1.xpose.msra.mxu0 %v835
        %864 = vmatprep.subr.mxu0 0.0
        %865 = vmatpush1.xpose.msra.mxu0 %v832
        %866 = vmatprep.subr.mxu0 0.0
        %867 = vmatpush1.xpose.msra.mxu0 %v829
        %868 = vmatprep.subr.mxu0 0.0
        %869 = vmatpush1.xpose.msra.mxu0 %v826
        %870 = vmatprep.subr.mxu0 0.0
        %871 = vmatpush1.xpose.msra.mxu0 %v823
        %872 = vmatprep.subr.mxu0 0.0
        %873 = vmatpush1.xpose.msra.mxu0 %v820
        %874 = vmatprep.subr.mxu0 0.0
        %875 = vmatpush1.xpose.msra.mxu0 %v817
        %876 = vmatprep.subr.mxu0 0.0
        %877 = vmatpush1.xpose.msra.mxu0 %v814
        %878 = vmatprep.subr.mxu0 0.0
        %879 = vmatpush1.xpose.msra.mxu0 %v811
        %880 = vmatprep.subr.mxu0 0.0
        %881 = vmatpush1.xpose.msra.mxu0 %v808
        %882 = vmatprep.subr.mxu0 0.0
        %883 = vmatpush1.xpose.msra.mxu0 %v805
        %884 = vmatprep.subr.mxu0 0.0
        %885 = vmatpush2.xpose.msra.mxu0 0.0
        %886 = vmatprep.subr.mxu0 0.0
        %887 = vmatpush2.xpose.msra.mxu0 0.0
        %888 = vmatprep.subr.mxu0 0.0
        %889 = vmatpush2.xpose.msra.mxu0 0.0
        %890 = vmatprep.subr.mxu0 0.0
        %891 = vmatpush2.xpose.msra.mxu0 0.0
        %892 = vmatprep.subr.mxu0 0.0
        %893 = vmatpush2.xpose.msra.mxu0 0.0
        %894 = vmatprep.subr.mxu0 0.0
        %895 = vmatpush2.xpose.msra.mxu0 0.0
        %896 = vmatprep.subr.mxu0 0.0
        %897 = vmatpush2.xpose.msra.mxu0 0.0
        %898 = vmatprep.subr.mxu0 0.0
        %899 = vmatpush2.xpose.msra.mxu0 0.0
        %900 = vmatprep.subr.mxu0 0.0
        %901 = vmatpush2.xpose.msra.mxu0 0.0
        %902 = vmatprep.subr.mxu0 0.0
        %903 = vmatpush2.xpose.msra.mxu0 0.0
        %904 = vmatprep.subr.mxu0 0.0
        %905 = vmatpush2.xpose.msra.mxu0 0.0
        %906 = vmatprep.subr.mxu0 0.0
        %907 = vmatpush2.xpose.msra.mxu0 0.0
        %908 = vmatprep.subr.mxu0 0.0
        %909 = vmatpush2.xpose.msra.mxu0 0.0
        %910 = vmatprep.subr.mxu0 0.0
        %911 = vmatpush2.xpose.msra.mxu0 0.0
        %912 = vmatprep.subr.mxu0 0.0
        %913 = vmatpush2.xpose.msra.mxu0 0.0
        %914 = vmatprep.subr.mxu0 0.0
        %915 = vmatpush2.xpose.msra.mxu0 0.0
        %916 = vmatprep.mubr.f32.mxu0 0.0
        %917 = vmatmul.mubr.f32.gmra.mxu0 %v802
        %v918 = vpop.f32.mrf.mxu0
        %v919 = vadd.f32 0.0, %v918
        %v920 = vpop.f32.mrf.mxu0
        %921 = vdwg.mxu0
        %v922 = vld [vmem:[%s377] sm:$0x1]
        %v923 = vlaneseq
        %v924 = vshrl.u32 %v923, 7
        %v925 = vsub.s32 0, %v924
        %v926 = vrot.slane %v922, %v925
        %vm927 = vcmp.eq.s32.totalorder %v401, %v926
        %v928 = vlaneseq
        %v929 = vshrl.u32 %v928, 7
        %v930 = vsub.s32 0, %v929
        %v931 = vrot.slane %v919, %v930
        %v932 = vsel %vm927, %v931, -1e+30
        %933 = vmax.xlane.f32.xlu0 %v932
        %v934 = vpop.xlane.xlu0 %933
        %v935 = vld [vmem:[#allocation3] sm:$0xff]
        %v936 = vmax.f32 %v935, %v934
        %v937 = vsub.f32 %v935, %v936
        %v938 = vmul.f32 %v937, 1.442695
        %v939 = vpow.pop %v938
        %941 = vset.pattern.permute.xlu0 0
        %942 = vperm.xlu0 %941, %v936
        %v943 = vpop.permute.xlu0 %942
        %v945 = vsel %vm927, %v943, 0.0
        %v946 = vrot.slane %v945, 4
        %v947 = vadd.f32 %v945, %v946
        %v948 = vrot.slane %v947, 2
        %v949 = vadd.f32 %v947, %v948
        %v950 = vrot.slane %v949, 1
        %v951 = vadd.f32 %v949, %v950
        %v952 = vsub.f32 %v919, %v951
        %v953 = vmul.f32 %v952, 1.442695
        %v954 = vpow.pop %v953
        %v955 = vlaneseq
        %v956 = vshrl.u32 %v955, 7
        %v957 = vsub.s32 0, %v956
        %v958 = vrot.slane %v954, %v957
        %v959 = vsel %vm927, %v958, 0.0
        %960 = vmatprep.subr.mxu0 0.0
        %961 = vmatpush1.msra.mxu0 %v513
        %962 = vmatprep.subr.mxu0 0.0
        %963 = vmatpush1.msra.mxu0 %v512
        %964 = vmatprep.subr.mxu0 0.0
        %965 = vmatpush1.msra.mxu0 %v511
        %966 = vmatprep.subr.mxu0 0.0
        %967 = vmatpush1.msra.mxu0 %v510
        %968 = vmatprep.subr.mxu0 0.0
        %969 = vmatpush1.msra.mxu0 %v509
        %970 = vmatprep.subr.mxu0 0.0
        %971 = vmatpush1.msra.mxu0 %v508
        %972 = vmatprep.subr.mxu0 0.0
        %973 = vmatpush1.msra.mxu0 %v507
        %974 = vmatprep.subr.mxu0 0.0
        %975 = vmatpush1.msra.mxu0 %v506
        %976 = vmatprep.subr.mxu0 0.0
        %977 = vmatpush1.msra.mxu0 %v505
        %978 = vmatprep.subr.mxu0 0.0
        %979 = vmatpush1.msra.mxu0 %v504
        %980 = vmatprep.subr.mxu0 0.0
        %981 = vmatpush1.msra.mxu0 %v503
        %982 = vmatprep.subr.mxu0 0.0
        %983 = vmatpush1.msra.mxu0 %v502
        %984 = vmatprep.subr.mxu0 0.0
        %985 = vmatpush1.msra.mxu0 %v501
        %986 = vmatprep.subr.mxu0 0.0
        %987 = vmatpush1.msra.mxu0 %v500
        %988 = vmatprep.subr.mxu0 0.0
        %989 = vmatpush1.msra.mxu0 %v499
        %990 = vmatprep.subr.mxu0 0.0
        %991 = vmatpush1.msra.mxu0 %v498
        %992 = vmatprep.subr.mxu0 0.0
        %993 = vmatpush2.msra.mxu0 0.0
        %994 = vmatprep.subr.mxu0 0.0
        %995 = vmatpush2.msra.mxu0 0.0
        %996 = vmatprep.subr.mxu0 0.0
        %997 = vmatpush2.msra.mxu0 0.0
        %998 = vmatprep.subr.mxu0 0.0
        %999 = vmatpush2.msra.mxu0 0.0
        %1000 = vmatprep.subr.mxu0 0.0
        %1001 = vmatpush2.msra.mxu0 0.0
        %1002 = vmatprep.subr.mxu0 0.0
        %1003 = vmatpush2.msra.mxu0 0.0
        %1004 = vmatprep.subr.mxu0 0.0
        %1005 = vmatpush2.msra.mxu0 0.0
        %1006 = vmatprep.subr.mxu0 0.0
        %1007 = vmatpush2.msra.mxu0 0.0
        %1008 = vmatprep.subr.mxu0 0.0
        %1009 = vmatpush2.msra.mxu0 0.0
        %1010 = vmatprep.subr.mxu0 0.0
        %1011 = vmatpush2.msra.mxu0 0.0
        %1012 = vmatprep.subr.mxu0 0.0
        %1013 = vmatpush2.msra.mxu0 0.0
        %1014 = vmatprep.subr.mxu0 0.0
        %1015 = vmatpush2.msra.mxu0 0.0
        %1016 = vmatprep.subr.mxu0 0.0
        %1017 = vmatpush2.msra.mxu0 0.0
        %1018 = vmatprep.subr.mxu0 0.0
        %1019 = vmatpush2.msra.mxu0 0.0
        %1020 = vmatprep.subr.mxu0 0.0
        %1021 = vmatpush2.msra.mxu0 0.0
        %1022 = vmatprep.subr.mxu0 0.0
        %1023 = vmatpush2.msra.mxu0 0.0
        %1024 = vmatprep.mubr.f32.mxu0 0.0
        %1025 = vmatmul.mubr.f32.gmra.mxu0 %v959
        %v1026 = vpop.f32.mrf.mxu0
        %v1027 = vadd.f32 0.0, %v1026
        %v1028 = vpop.f32.mrf.mxu0
        %1029 = vdwg.mxu0
        %v1030 = vld [vmem:[#allocation4] sm:$0xff]
        %v1031 = vmul.f32 %v939, %v1030
        %1032 = vadd.xlane.f32.xlu0 %v959
        %v1033 = vpop.xlane.xlu0 %1032
        %v1034 = vadd.f32 %v1031, %v1033
        %vm1035 = vcmask 7168
        %1036 = vst.msk [vmem:[#allocation4] sm:$0xff] %vm1035, %v1034
        %v1037 = vld [vmem:[#allocation2] sm:$0xff]
        %1039 = vset.pattern.permute.xlu0 0
        %1040 = vperm.xlu0 %1039, %v939
        %v1041 = vpop.permute.xlu0 %1040
        %v1043 = vmul.f32 %v1041, %v1037
        %v1044 = vadd.f32 %v1043, %v1027
        %1045 = vst.msk [vmem:[#allocation2] sm:$0xff] %vm525, %v1044
        %1046 = vst.msk [vmem:[#allocation3] sm:$0xff] %vm1035, %v936
        %p1047 = scmp.eq.s32.totalorder %s27, 1
        // Predicated region
        $region45: #{tpu_custom_call.1} parent=39 // pred_check
          %p1048 = pneg %p1047
        $region46: #{tpu_custom_call.1} parent=39 // pred_check_branch
          %1050 = sbr.rel (%p1048) target = $region48
        $region47: #{tpu_custom_call.1} parent=39 // pred_region
          %v1051 = vld [vmem:[#allocation2] sm:$0xff]
          %1052 = vst.msk [vmem:[%s338] sm:$0xff] %vm525, %v1051
          %v1053 = vld [vmem:[#allocation3] sm:$0xff]
          %1054 = vst.msk [vmem:[%s383] sm:$0xff] %vm1035, %v1053
          %v1055 = vld [vmem:[#allocation4] sm:$0xff]
          %1056 = vst.msk [vmem:[%s387] sm:$0xff] %vm1035, %v1055
        $region48: #{tpu_custom_call.1} parent=39 // pred_fallthru
          _
        %s1057 = sand.u32 %s169, 1
        %s1058 = scalar_lea.sflag [#allocation6], %s1057
        %s1059 = sand.u32 %s169, 1
        %s1060 = smul.addr %s1059, 8
        %s1061 = scalar_lea.vmem [#allocation5], %s1060
        %p1062 = scmp.lt.s32.totalorder %s26, 1
        %s1063 = scalar_select %p1062, %s26, 1
        %s1064 = smul.addr %s1063, 8
        %s1065 = scalar_lea.vmem %s6, %s1064
        %p1066 = scmp.lt.s32.totalorder %s26, 1
        %s1067 = scalar_select %p1066, %s26, 1
        %s1068 = smul.addr %s1067, 8
        %s1069 = scalar_lea.vmem %s7, %s1068
        // Predicated region
        $region49: #{tpu_custom_call.1} parent=39 // pred_check
          %p1070 = pneg %p179
        $region50: #{tpu_custom_call.1} parent=39 // pred_check_branch
          %1072 = sbr.rel (%p1070) target = $region52
        $region51: #{tpu_custom_call.1} parent=39 // pred_region
          %s1074 = ssub.s32 128, 128
          %1075 = vsyncadd %s1058, %s1074
          %s1076 = smul.addr %s26, 128
          %s1077 = scalar_lea.hbm %s5, %s1076
          %s1079 = sshll.u32 %s1061, 4
          %s1080 = int_to_ptr.vmem [resolvable:$true] %s1079
          %1082 = dma.vmem_to_hbm [thread:$0]  %s1080, 128, %s1077, %s1058
        $region52: #{tpu_custom_call.1} parent=39 // pred_fallthru
          _
        // Predicated region
        $region53: #{tpu_custom_call.1} parent=39 // pred_check
          %p1083 = pneg %p205
        $region54: #{tpu_custom_call.1} parent=39 // pred_check_branch
          %1085 = sbr.rel (%p1083) target = $region56
        $region55: #{tpu_custom_call.1} parent=39 // pred_region
          _
        $region56: #{tpu_custom_call.1} parent=39 // pred_fallthru
          _
        // Predicated region
        $region57: #{tpu_custom_call.1} parent=39 // pred_check
          %p1086 = pneg %p231
        $region58: #{tpu_custom_call.1} parent=39 // pred_check_branch
          %1088 = sbr.rel (%p1086) target = $region60
        $region59: #{tpu_custom_call.1} parent=39 // pred_region
          _
        $region60: #{tpu_custom_call.1} parent=39 // pred_fallthru
          _
      $region40: #{tpu_custom_call.1} parent=5 // pred_fallthru
        _
      %p1089 = scmp.le.s32.totalorder 2, %s17
      // Predicated region
      $region61: #{tpu_custom_call.1} parent=5 // pred_check
        %p1090 = pneg %p1089
      $region62: #{tpu_custom_call.1} parent=5 // pred_check_branch
        %1092 = sbr.rel (%p1090) target = $region64
      $region63: #{tpu_custom_call.1} parent=5 // pred_region
        %s1093 = ssub.s32 %s17, 2
        // Predicated region
        $region65: #{tpu_custom_call.1} parent=63 // pred_check
          %p1094 = pneg %p185
        $region66: #{tpu_custom_call.1} parent=63 // pred_check_branch
          %1096 = sbr.rel (%p1094) target = $region68
        $region67: #{tpu_custom_call.1} parent=63 // pred_region
          %s1097 = sand.u32 %s170, 1
          %s1098 = scalar_lea.sflag [#allocation6], %s1097
          %s1099 = sand.u32 %s170, 1
          %s1100 = smul.addr %s1099, 8
          %s1101 = scalar_lea.vmem [#allocation5], %s1100
          %1102 = dma.done %s1098, 128
        $region68: #{tpu_custom_call.1} parent=63 // pred_fallthru
          _
        // Predicated region
        $region69: #{tpu_custom_call.1} parent=63 // pred_check
          %p1103 = pneg %p211
        $region70: #{tpu_custom_call.1} parent=63 // pred_check_branch
          %1105 = sbr.rel (%p1103) target = $region72
        $region71: #{tpu_custom_call.1} parent=63 // pred_region
          %p1106 = scmp.lt.s32.totalorder %s28, 1
          %s1107 = scalar_select %p1106, %s28, 1
          %s1108 = smul.addr %s1107, 8
          %s1109 = scalar_lea.vmem %s6, %s1108
        $region72: #{tpu_custom_call.1} parent=63 // pred_fallthru
          _
        // Predicated region
        $region73: #{tpu_custom_call.1} parent=63 // pred_check
          %p1110 = pneg %p237
        $region74: #{tpu_custom_call.1} parent=63 // pred_check_branch
          %1112 = sbr.rel (%p1110) target = $region76
        $region75: #{tpu_custom_call.1} parent=63 // pred_region
          %p1113 = scmp.lt.s32.totalorder %s28, 1
          %s1114 = scalar_select %p1113, %s28, 1
          %s1115 = smul.addr %s1114, 8
          %s1116 = scalar_lea.vmem %s7, %s1115
        $region76: #{tpu_custom_call.1} parent=63 // pred_fallthru
          _
      $region64: #{tpu_custom_call.1} parent=5 // pred_fallthru
        _
    $region6: #{tpu_custom_call.1} parent=1 // loop_footer
      %s21 = sadd.s32 1, %s17
    $region7: #{tpu_custom_call.1} parent=1 // loop_footer_branch
      %16 = sbr.rel target = $region3
    $region8: #{tpu_custom_call.1} parent=1 // loop_exit
      _
    %1117 = vsyncpa [#allocation6], 1
    %s1118 = scalar_lea.sflag [#allocation6], 1
    %1119 = vsyncpa %s1118, 1

</llo_original>
